<compile_context>
chip_gen: v7x
topology: tpu7x:2x2x1
jax: 0.10.0
libtpu: 0.0.40
codegen_flags: <defaults>
</compile_context>

<pallas_src>
import jax
import jax.numpy as jnp
from jax.experimental import pallas as pl
from jax.experimental.pallas import tpu as pltpu


def _round_up(x, m):
    return (x + m - 1) // m * m


def mlp_kernel(x_ref, w1_ref, b1_ref, w2t_ref, b2_ref, o_ref):
    # x_ref: (TB, D) batch-major input tile; w1_ref: (D, H); b1/w2t: (1, H); b2: (1, 1).
    # Layer 1 on the MXU, f32 accumulation.
    h = jnp.dot(x_ref[...], w1_ref[...], preferred_element_type=jnp.float32)   # (TB, H)
    h = jnp.maximum(h + b1_ref[...], 0.0)                                      # bias + ReLU (VPU)
    # Layer 2 (H -> 1): VPU multiply + lane reduce (XLU) -- keeps the MXU path clean and the
    # VPU/XLU slots (idle in this mem-bound kernel) do the work.
    y = jnp.sum(h * w2t_ref[...], axis=-1, keepdims=True) + b2_ref[...]        # (TB, 1)
    o_ref[...] = y.astype(o_ref.dtype)


def mlp_forward(x, w1, b1, w2, b2, *, block_b=None, cast_inputs_to_bf16=False,
                vmem_budget_bytes=24 << 20):
    """x: (B, D); w1: (D, H); b1: (H,); w2: (H, 1); b2: (1,).  Returns (B, 1) f32."""
    B, D = x.shape
    H = w1.shape[1]
    O = w2.shape[1]
    assert O == 1, "MLP spec has a single output unit"

    if cast_inputs_to_bf16:
        # Halves the dominant x-stream HBM bytes on every generation (bf16 feeds the MXU,
        # accumulation stays f32).  Only a net win if this cast fuses with the producer of x
        # (under jit) or x already lives in bf16; a standalone convert re-reads the f32 array.
        x = x.astype(jnp.bfloat16)
        w1 = w1.astype(jnp.bfloat16)

    in_itemsize = jnp.dtype(x.dtype).itemsize
    # Sublane packing: f32 -> 8-row alignment, bf16 -> 16, int8/fp8 -> 32.
    align = 8 if in_itemsize >= 4 else 8 * (4 // in_itemsize)

    # ---- VMEM accounting: count everything live, not just the x tile -----------------------
    #   2x (tb, D) x tile (double-buffered)            -> 2*D*itemsize   bytes / row
    #   (tb, H) f32 h + ReLU result (2x for headroom)  -> 2*H*4          bytes / row
    #   2x (tb, 1) f32 output (double-buffered)        -> 2*4            bytes / row
    #   2x (D, H) w1 (constant index map still double-buffers) + bias/w2t/b2 vectors (fixed)
    row_bytes = 2 * D * in_itemsize + 2 * H * 4 + 2 * 4
    fixed_bytes = 2 * D * H * in_itemsize + 4 * (2 * H + 2) * 4
    avail = max(vmem_budget_bytes - fixed_bytes, row_bytes * align)
    tb_cap = max(align, (avail // row_bytes) // align * align)

    b_ceil = _round_up(B, align)
    tb = min(tb_cap, b_ceil)
    if block_b is not None:
        tb = min(tb, max(align, _round_up(block_b, align)))
    # Keep >= 4 grid steps (2 per TensorCore on v7x megacore, and enough steps for the
    # software pipeline) once each step still moves >= ~512 KiB of x.
    min_step_rows = _round_up(max(align, (512 << 10) // max(D * in_itemsize, 1)), align)
    if b_ceil >= 4 * min_step_rows:
        tb = min(tb, max(min_step_rows, _round_up(pl.cdiv(b_ceil, 4), align)))
    tb = max(align, tb)

    b_pad = _round_up(B, tb)
    if b_pad != B:
        x = jnp.pad(x, ((0, b_pad - B), (0, 0)))   # zero rows; sliced off below

    b1c = b1.reshape(1, H).astype(jnp.float32)
    w2t = w2.reshape(H, O).T.astype(jnp.float32)   # (1, H)
    b2c = b2.reshape(1, O).astype(jnp.float32)

    grid = (b_pad // tb,)
    out = pl.pallas_call(
        mlp_kernel,
        out_shape=jax.ShapeDtypeStruct((b_pad, O), jnp.float32),
        grid=grid,
        in_specs=[
            pl.BlockSpec((tb, D), lambda i: (i, 0)),   # x tile streams with the grid
            pl.BlockSpec((D, H), lambda i: (0, 0)),    # weights stay VMEM-resident
            pl.BlockSpec((1, H), lambda i: (0, 0)),
            pl.BlockSpec((1, H), lambda i: (0, 0)),
            pl.BlockSpec((1, O), lambda i: (0, 0)),
        ],
        out_specs=pl.BlockSpec((tb, O), lambda i: (i, 0)),
        compiler_params=pltpu.CompilerParams(
            dimension_semantics=("parallel",),                 # independent batch tiles
            # Raise v5e's 16 MiB scoped-VMEM default so the large-tile win carries there;
            # stays <= v6e/v7x defaults (32 MiB) and well under v7x's 64 MiB physical.
            vmem_limit_bytes=int(min(vmem_budget_bytes + (4 << 20), 28 << 20)),
        ),
        cost_estimate=pl.CostEstimate(
            flops=2 * b_pad * D * H + 4 * b_pad * H,
            transcendentals=0,
            bytes_accessed=(b_pad * D * in_itemsize            # x stream (actual itemsize)
                            + b_pad * O * 4                    # output
                            + D * H * in_itemsize              # w1
                            + (2 * H + O + 1) * 4),            # b1, w2, b2
        ),
    )(x, w1, b1c, w2t, b2c)

    return out[:B]


def init_params(key, input_size, hidden=64, out=1):
    # Deterministic init mimicking torch.nn.Linear (uniform +-1/sqrt(fan_in)).
    k1, k2, k3, k4 = jax.random.split(key, 4)
    lim1 = 1.0 / jnp.sqrt(jnp.float32(input_size))
    lim2 = 1.0 / jnp.sqrt(jnp.float32(hidden))
    w1 = jax.random.uniform(k1, (input_size, hidden), jnp.float32, -lim1, lim1)
    b1 = jax.random.uniform(k2, (hidden,), jnp.float32, -lim1, lim1)
    w2 = jax.random.uniform(k3, (hidden, out), jnp.float32, -lim2, lim2)
    b2 = jax.random.uniform(k4, (out,), jnp.float32, -lim2, lim2)
    return w1, b1, w2, b2


if __name__ == "__main__":
    key = jax.random.PRNGKey(0)
    kx, kx2, kp = jax.random.split(key, 3)

    batch, input_size = 8, 32
    x = jax.random.normal(kx, (batch, input_size), jnp.float32)
    w1, b1, w2, b2 = init_params(kp, input_size)

    # Small batch (single tile), f32 path.
    out = jax.block_until_ready(mlp_forward(x, w1, b1, w2, b2))
    ref = jnp.maximum(x @ w1 + b1, 0.0) @ w2 + b2
    assert out.shape == (batch, 1)
    assert jnp.allclose(out, ref, atol=1e-5, rtol=1e-5)

    # Larger, non-multiple-of-tile batch with a forced small tile exercises the multi-step
    # grid (software pipeline) + padding path.
    xb = jax.random.normal(kx2, (1000, input_size), jnp.float32)
    outb = jax.block_until_ready(mlp_forward(xb, w1, b1, w2, b2, block_b=256))
    refb = jnp.maximum(xb @ w1 + b1, 0.0) @ w2 + b2
    assert outb.shape == (1000, 1)
    assert jnp.allclose(outb, refb, atol=1e-5, rtol=1e-5)

    # bf16 input-stream path (HBM-bandwidth optimization, all generations); looser tolerance.
    out_bf16 = jax.block_until_ready(
        mlp_forward(x, w1, b1, w2, b2, cast_inputs_to_bf16=True))
    assert jnp.allclose(out_bf16, ref, atol=5e-2, rtol=5e-2)

    print("KERNEL_OK")
</pallas_src>

<mosaic_0001>
module attributes {stable_mosaic.version = 11 : i64} {
  func.func @mlp_kernel(%arg0: i32, %arg1: memref<8x32xf32, #tpu.memory_space<vmem>>, %arg2: memref<32x64xf32, #tpu.memory_space<vmem>>, %arg3: memref<1x64xf32, #tpu.memory_space<vmem>>, %arg4: memref<1x64xf32, #tpu.memory_space<vmem>>, %arg5: memref<1x1xf32, #tpu.memory_space<vmem>>, %arg6: memref<8x1xf32, #tpu.memory_space<vmem>>) attributes {dimension_semantics = [#tpu.dimension_semantics<parallel>], iteration_bounds = array<i64: 1>, scalar_prefetch = 0 : i64, scratch_operands = 0 : i64, tpu.core_type = #tpu.core_type<tc>, window_params = [{transform_indices = @transform_0, window_bounds = array<i64: 8, 32>}, {pipeline_mode = #tpu.pipeline_mode<synchronous>, transform_indices = @transform_1, window_bounds = array<i64: 32, 64>}, {pipeline_mode = #tpu.pipeline_mode<synchronous>, transform_indices = @transform_2, window_bounds = array<i64: 1, 64>}, {pipeline_mode = #tpu.pipeline_mode<synchronous>, transform_indices = @transform_3, window_bounds = array<i64: 1, 64>}, {pipeline_mode = #tpu.pipeline_mode<synchronous>, transform_indices = @transform_4, window_bounds = array<i64: 1, 1>}, {transform_indices = @transform_5, window_bounds = array<i64: 8, 1>}]} {
    %c0 = arith.constant 0 : index
    %c0_0 = arith.constant 0 : index
    %0 = vector.load %arg1[%c0, %c0_0] : memref<8x32xf32, #tpu.memory_space<vmem>>, vector<8x32xf32>
    %c0_1 = arith.constant 0 : index
    %c0_2 = arith.constant 0 : index
    %1 = vector.load %arg2[%c0_1, %c0_2] : memref<32x64xf32, #tpu.memory_space<vmem>>, vector<32x64xf32>
    %cst = arith.constant dense<0.000000e+00> : vector<8x64xf32>
    %2 = tpu.matmul %0, %1, %cst {dimension_numbers = #tpu.dot_dimension_numbers<[1], [0], [0], [1], [0, 0, 1, 1], [], []>} : vector<8x32xf32>, vector<32x64xf32>, vector<8x64xf32> -> vector<8x64xf32>
    %c0_3 = arith.constant 0 : index
    %c0_4 = arith.constant 0 : index
    %3 = vector.load %arg3[%c0_3, %c0_4] : memref<1x64xf32, #tpu.memory_space<vmem>>, vector<1x64xf32>
    %4 = vector.broadcast %3 : vector<1x64xf32> to vector<8x64xf32>
    %5 = arith.addf %2, %4 : vector<8x64xf32>
    %cst_5 = arith.constant 0.000000e+00 : f32
    %6 = vector.broadcast %cst_5 : f32 to vector<8x64xf32>
    %7 = arith.maximumf %5, %6 : vector<8x64xf32>
    %c0_6 = arith.constant 0 : index
    %c0_7 = arith.constant 0 : index
    %8 = vector.load %arg4[%c0_6, %c0_7] : memref<1x64xf32, #tpu.memory_space<vmem>>, vector<1x64xf32>
    %9 = vector.broadcast %8 : vector<1x64xf32> to vector<8x64xf32>
    %10 = arith.mulf %7, %9 : vector<8x64xf32>
    %cst_8 = arith.constant dense<0.000000e+00> : vector<8xf32>
    %11 = vector.multi_reduction <add>, %10, %cst_8 [1] : vector<8x64xf32> to vector<8xf32>
    %12 = vector.shape_cast %11 : vector<8xf32> to vector<8x1xf32>
    %c0_9 = arith.constant 0 : index
    %c0_10 = arith.constant 0 : index
    %13 = vector.load %arg5[%c0_9, %c0_10] : memref<1x1xf32, #tpu.memory_space<vmem>>, vector<1x1xf32>
    %14 = vector.broadcast %13 : vector<1x1xf32> to vector<8x1xf32>
    %15 = arith.addf %12, %14 : vector<8x1xf32>
    %c0_11 = arith.constant 0 : index
    %c0_12 = arith.constant 0 : index
    %16 = vector.load %arg6[%c0_11, %c0_12] : memref<8x1xf32, #tpu.memory_space<vmem>>, vector<8x1xf32>
    tpu.vector_store %arg6[%c0_11, %c0_12], %15 {strides = array<i32>} : memref<8x1xf32, #tpu.memory_space<vmem>>, vector<8x1xf32>,
    return
  }
  func.func @transform_0(%arg0: i32) -> (i32, i32) {
    %c0_i32 = arith.constant 0 : i32
    %c0_i32_0 = arith.constant 0 : i32
    return %arg0, %c0_i32 : i32, i32
  }
  func.func @transform_1(%arg0: i32) -> (i32, i32) {
    %c0_i32 = arith.constant 0 : i32
    %c0_i32_0 = arith.constant 0 : i32
    %c0_i32_1 = arith.constant 0 : i32
    return %c0_i32, %c0_i32_0 : i32, i32
  }
  func.func @transform_2(%arg0: i32) -> (i32, i32) {
    %c0_i32 = arith.constant 0 : i32
    %c0_i32_0 = arith.constant 0 : i32
    %c0_i32_1 = arith.constant 0 : i32
    return %c0_i32, %c0_i32_0 : i32, i32
  }
  func.func @transform_3(%arg0: i32) -> (i32, i32) {
    %c0_i32 = arith.constant 0 : i32
    %c0_i32_0 = arith.constant 0 : i32
    %c0_i32_1 = arith.constant 0 : i32
    return %c0_i32, %c0_i32_0 : i32, i32
  }
  func.func @transform_4(%arg0: i32) -> (i32, i32) {
    %c0_i32 = arith.constant 0 : i32
    %c0_i32_0 = arith.constant 0 : i32
    %c0_i32_1 = arith.constant 0 : i32
    return %c0_i32, %c0_i32_0 : i32, i32
  }
  func.func @transform_5(%arg0: i32) -> (i32, i32) {
    %c0_i32 = arith.constant 0 : i32
    %c0_i32_0 = arith.constant 0 : i32
    return %arg0, %c0_i32 : i32, i32
  }
}

</mosaic_0001>

<llo_original>
// kernel: tpu_custom_call.1
$region0: #{tpu_custom_call.1}
  #allocation0 [shape = 'u32[]', space=smem, size = 0x4, offset = 0x4, fixed_abs, tag = 'smem constant byte address 0x4 - core index']
  #allocation1 [shape = 'u32[144,128]{1,0:T(1,128)}', space=vmem, size = 0x12000, scoped, tag = 'internal scratch']
  #allocation2 [shape = 'f32[1,1]{1,0:T(1,128)S(1)}', space=vmem, size = 0x200, scoped, tag = 'scoped memory for tpu_custom_call.1']
  %s0 = inlined_call_operand.hbm [shape: f32[8,32], index: 0, kind: input, shape index: {}]
  %s1 = inlined_call_operand.hbm [shape: f32[32,64], index: 1, kind: input, shape index: {}]
  %s2 = inlined_call_operand.vmem [shape: f32[1,64], index: 2, kind: input, shape index: {}]
  %s3 = inlined_call_operand.vmem [shape: f32[1,64], index: 3, kind: input, shape index: {}]
  %s4 = inlined_call_operand.<no memory space> [shape: f32[1,1], index: 4, kind: input, shape index: {}]
  %s5 = inlined_call_operand.vmem [shape: f32[8,1], index: 5, kind: output, shape index: {}]
  %s6 = sld [smem:[#allocation0]]
  $region38: #{tpu_custom_call.1} parent=0
    _
  %s8 = ssub.s32 1, %s6
  %s9 = scalar_select 0, %s8, %s6
  %v10 = vstv %s4
  %11 = vst [vmem:[#allocation2] sm:$0x1] %v10
  $region1: #{tpu_custom_call.1} parent=0
    #allocation3 [shape = 'u8[4096]{0}', space=vmem, size = 0x1000, scoped, tag = 'input window, operand 0, single buffered']
    #allocation4 [shape = 's32[1]{0}', space=sflag, size = 0x4, scoped, tag = 'scoped memory for tpu_custom_call.1']
    #allocation5 [shape = 'u8[16384]{0}', space=vmem, size = 0x4000, scoped, tag = 'input window, operand 1, single buffered']
    #allocation6 [shape = 's32[1]{0}', space=sflag, size = 0x4, scoped, tag = 'scoped memory for tpu_custom_call.1']
    %12 = vsyncpa [#allocation4], 0
    %13 = vsyncpa [#allocation6], 0
    // Predicated region
    $region2: #{tpu_custom_call.1} parent=1 // pred_check
      _
    $region3: #{tpu_custom_call.1} parent=1 // pred_check_branch
      %15 = sbr.rel (0) target = $region5
    $region4: #{tpu_custom_call.1} parent=1 // pred_region
      %s17 = ssub.s32 128, 128
      %18 = vsyncadd [#allocation4], %s17
      %s20 = sshll.u32 [#allocation3], 4
      %s21 = int_to_ptr.vmem [resolvable:$true] %s20
      %23 = dma.hbm_to_vmem [thread:$0]  %s0, 128, %s21, [#allocation4]
    $region5: #{tpu_custom_call.1} parent=1 // pred_fallthru
      _
    // Predicated region
    $region6: #{tpu_custom_call.1} parent=1 // pred_check
      _
    $region7: #{tpu_custom_call.1} parent=1 // pred_check_branch
      %25 = sbr.rel (0) target = $region9
    $region8: #{tpu_custom_call.1} parent=1 // pred_region
      %s27 = ssub.s32 512, 512
      %28 = vsyncadd [#allocation6], %s27
      %s29 = sshll.u32 [#allocation5], 4
      %s30 = int_to_ptr.vmem [resolvable:$true] %s29
      %35 = dma.hbm_to_vmem [thread:$0]  %s1, 512, %s30, [#allocation6], 128, 128, 8
    $region9: #{tpu_custom_call.1} parent=1 // pred_fallthru
      _
    // Predicated region
    $region10: #{tpu_custom_call.1} parent=1 // pred_check
      _
    $region11: #{tpu_custom_call.1} parent=1 // pred_check_branch
      %37 = sbr.rel (0) target = $region13
    $region12: #{tpu_custom_call.1} parent=1 // pred_region
      _
    $region13: #{tpu_custom_call.1} parent=1 // pred_fallthru
      _
    // Predicated region
    $region14: #{tpu_custom_call.1} parent=1 // pred_check
      _
    $region15: #{tpu_custom_call.1} parent=1 // pred_check_branch
      %39 = sbr.rel (0) target = $region17
    $region16: #{tpu_custom_call.1} parent=1 // pred_region
      _
    $region17: #{tpu_custom_call.1} parent=1 // pred_fallthru
      _
    // Predicated region
    $region18: #{tpu_custom_call.1} parent=1 // pred_check
      _
    $region19: #{tpu_custom_call.1} parent=1 // pred_check_branch
      %41 = sbr.rel (0) target = $region21
    $region20: #{tpu_custom_call.1} parent=1 // pred_region
      _
    $region21: #{tpu_custom_call.1} parent=1 // pred_fallthru
      _
    // Predicated region
    $region22: #{tpu_custom_call.1} parent=1 // pred_check
      _
    $region23: #{tpu_custom_call.1} parent=1 // pred_check_branch
      %43 = sbr.rel (0) target = $region25
    $region24: #{tpu_custom_call.1} parent=1 // pred_region
      %44 = dma.done [#allocation4], 128
    $region25: #{tpu_custom_call.1} parent=1 // pred_fallthru
      _
    // Predicated region
    $region26: #{tpu_custom_call.1} parent=1 // pred_check
      _
    $region27: #{tpu_custom_call.1} parent=1 // pred_check_branch
      %46 = sbr.rel (0) target = $region29
    $region28: #{tpu_custom_call.1} parent=1 // pred_region
      %47 = dma.done [#allocation6], 512
    $region29: #{tpu_custom_call.1} parent=1 // pred_fallthru
      _
    %v48 = vld [vmem:[#allocation3] sm:$0xff]
    %v49 = vld [vmem:[#allocation5] sm:$0xff]
    %v50 = vld [vmem:[#allocation5 + $0x8] sm:$0xff]
    %v51 = vld [vmem:[#allocation5 + $0x10] sm:$0xff]
    %v52 = vld [vmem:[#allocation5 + $0x18] sm:$0xff]
    %v53 = vld [vmem:[%s2] sm:$0x1]
    %v55 = vlaneseq
    %v56 = vshrl.u32 %v55, 7
    %v57 = vsub.s32 0, %v56
    %v58 = vrot.slane %v53, %v57
    %vm60 = vcmask 261120
    %v62 = vsel %vm60, %v48, 0
    %64 = vmatprep.subr.mxu0 0.0
    %65 = vmatpush1.msra.mxu0 %v49
    %66 = vmatprep.subr.mxu0 0.0
    %67 = vmatpush1.msra.mxu0 %v50
    %68 = vmatprep.subr.mxu0 0.0
    %69 = vmatpush1.msra.mxu0 %v51
    %70 = vmatprep.subr.mxu0 0.0
    %71 = vmatpush1.msra.mxu0 %v52
    %72 = vmatprep.subr.mxu0 0.0
    %73 = vmatpush1.msra.mxu0 0.0
    %74 = vmatprep.subr.mxu0 0.0
    %75 = vmatpush1.msra.mxu0 0.0
    %76 = vmatprep.subr.mxu0 0.0
    %77 = vmatpush1.msra.mxu0 0.0
    %78 = vmatprep.subr.mxu0 0.0
    %79 = vmatpush1.msra.mxu0 0.0
    %80 = vmatprep.subr.mxu0 0.0
    %81 = vmatpush1.msra.mxu0 0.0
    %82 = vmatprep.subr.mxu0 0.0
    %83 = vmatpush1.msra.mxu0 0.0
    %84 = vmatprep.subr.mxu0 0.0
    %85 = vmatpush1.msra.mxu0 0.0
    %86 = vmatprep.subr.mxu0 0.0
    %87 = vmatpush1.msra.mxu0 0.0
    %88 = vmatprep.subr.mxu0 0.0
    %89 = vmatpush1.msra.mxu0 0.0
    %90 = vmatprep.subr.mxu0 0.0
    %91 = vmatpush1.msra.mxu0 0.0
    %92 = vmatprep.subr.mxu0 0.0
    %93 = vmatpush1.msra.mxu0 0.0
    %94 = vmatprep.subr.mxu0 0.0
    %95 = vmatpush1.msra.mxu0 0.0
    %96 = vmatprep.subr.mxu0 0.0
    %97 = vmatpush1.msra.mxu0 0.0
    %98 = vmatprep.subr.mxu0 0.0
    %99 = vmatpush1.msra.mxu0 0.0
    %100 = vmatprep.subr.mxu0 0.0
    %101 = vmatpush1.msra.mxu0 0.0
    %102 = vmatprep.subr.mxu0 0.0
    %103 = vmatpush1.msra.mxu0 0.0
    %104 = vmatprep.subr.mxu0 0.0
    %105 = vmatpush1.msra.mxu0 0.0
    %106 = vmatprep.subr.mxu0 0.0
    %107 = vmatpush1.msra.mxu0 0.0
    %108 = vmatprep.subr.mxu0 0.0
    %109 = vmatpush1.msra.mxu0 0.0
    %110 = vmatprep.subr.mxu0 0.0
    %111 = vmatpush1.msra.mxu0 0.0
    %112 = vmatprep.subr.mxu0 0.0
    %113 = vmatpush1.msra.mxu0 0.0
    %114 = vmatprep.subr.mxu0 0.0
    %115 = vmatpush1.msra.mxu0 0.0
    %116 = vmatprep.subr.mxu0 0.0
    %117 = vmatpush1.msra.mxu0 0.0
    %118 = vmatprep.subr.mxu0 0.0
    %119 = vmatpush1.msra.mxu0 0.0
    %120 = vmatprep.subr.mxu0 0.0
    %121 = vmatpush1.msra.mxu0 0.0
    %122 = vmatprep.subr.mxu0 0.0
    %123 = vmatpush1.msra.mxu0 0.0
    %124 = vmatprep.subr.mxu0 0.0
    %125 = vmatpush1.msra.mxu0 0.0
    %126 = vmatprep.subr.mxu0 0.0
    %127 = vmatpush1.msra.mxu0 0.0
    %128 = vmatprep.mubr.f32.mxu0 0.0
    %129 = vmatmul.mubr.f32.gmra.mrb[0].mxu0 %v62
    %v130 = vpop.f32.mrb[0].mxu0
    %v131 = vadd.f32 %v58, %v130
    %v132 = vpop.f32.mrb[0].mxu0
    %133 = vdwg.mxu0
    %v134 = vmax.f32 %v131, 0.0
    %v135 = vld [vmem:[%s3] sm:$0x1]
    %v137 = vlaneseq
    %v138 = vshrl.u32 %v137, 7
    %v139 = vsub.s32 0, %v138
    %v140 = vrot.slane %v135, %v139
    %v142 = vmul.f32 %v134, %v140
    %vm143 = vcmask 523264
    %v144 = vsel %vm143, %v142, 0.0
    %145 = vadd.xlane.f32.xlu0 %v144
    %v146 = vpop.xlane.xlu0 %145
    %v147 = vld [vmem:[#allocation2] sm:$0x1]
    %v149 = vlaneseq
    %v150 = vshrl.u32 %v149, 7
    %v151 = vsub.s32 0, %v150
    %v152 = vrot.slane %v147, %v151
    %v154 = vadd.f32 %v146, %v152
    %vm155 = vcmask 7168
    %156 = vst.msk [vmem:[%s5] sm:$0xff] %vm155, %v154
    // Predicated region
    $region30: #{tpu_custom_call.1} parent=1 // pred_check
      _
    $region31: #{tpu_custom_call.1} parent=1 // pred_check_branch
      %158 = sbr.rel (0) target = $region33
    $region32: #{tpu_custom_call.1} parent=1 // pred_region
      _
    $region33: #{tpu_custom_call.1} parent=1 // pred_fallthru
      _
    // Predicated region
    $region34: #{tpu_custom_call.1} parent=1 // pred_check
      _
    $region35: #{tpu_custom_call.1} parent=1 // pred_check_branch
      %160 = sbr.rel (0) target = $region37
    $region36: #{tpu_custom_call.1} parent=1 // pred_region
      _
    $region37: #{tpu_custom_call.1} parent=1 // pred_fallthru
      _
    %161 = vsyncpa [#allocation4], 1
    %162 = vsyncpa [#allocation6], 1

</llo_original>
